<compile_context>
chip_gen: v5e
topology: v5e:2x2
jax: 0.10.0
libtpu: 0.0.40
codegen_flags: <defaults>
</compile_context>

<pallas_src>
import math
import functools

import jax
import jax.numpy as jnp
from jax.experimental import pallas as pl
from jax.experimental.pallas import tpu as pltpu

_LANE = 128          # lane width (last-dim tiling unit)
_SUBLANE = 8         # sublane width (second-to-last-dim tiling unit, f32)
_MAX_BATCH_TILE = 1024   # 1024 x 128 f32 tile = 512 KiB -> few MiB double-buffered


def _round_up(x, m):
    return ((x + m - 1) // m) * m


def _fused_mlp_kernel(*refs):
    """refs = (x_ref, w0_ref, b0_ref, w1_ref, b1_ref, ..., o_ref).

    Computes o = tanh(... tanh(tanh(x @ W0 + b0) @ W1 + b1) ...) for one batch
    tile.  The layer loop is a static Python loop (unrolled at trace time);
    every intermediate activation stays in VMEM/vregs and only the final
    activation is stored.
    """
    x_ref = refs[0]
    o_ref = refs[-1]
    wb_refs = refs[1:-1]
    n_layers = len(wb_refs) // 2

    h = x_ref[...]
    for m in range(n_layers):
        w = wb_refs[2 * m][...]            # (Kp, Np)  VMEM-resident weight
        b = wb_refs[2 * m + 1][...]        # (1,  Np)  VMEM-resident bias (f32)
        # If weights are bf16, cast the activation to bf16 so the MXU runs a
        # native bf16 x bf16 matmul with an f32 accumulate; f32 weights -> no-op.
        z = jnp.dot(h.astype(w.dtype), w,
                    preferred_element_type=jnp.float32) + b
        h = jnp.tanh(z)
    o_ref[...] = h.astype(o_ref.dtype)


def init_ddml_params(layer_shape, key):
    """Deterministic re-creation of DDMLNet.__init__ weight init.

    W ~ U(-stdv, stdv) with stdv = sqrt(6 / (fan_in + fan_out)); b = 0.
    Weights are stored as (in, out), i.e. the transpose of nn.Linear.weight,
    so the kernel computes x @ W directly on the MXU.
    """
    params = []
    for m in range(len(layer_shape) - 1):
        fan_in, fan_out = layer_shape[m], layer_shape[m + 1]
        stdv = math.sqrt(6.0 / (fan_in + fan_out))
        key, sub = jax.random.split(key)
        w = jax.random.uniform(
            sub, (fan_in, fan_out), dtype=jnp.float32,
            minval=-stdv, maxval=stdv)
        b = jnp.zeros((fan_out,), dtype=jnp.float32)
        params.append((w, b))
    return tuple(params)


def pad_params(params, dtype=jnp.float32):
    """One-time lane padding of the weight stack (done outside the forward).

    * Layer 0 keeps its original fan-in (x is passed unpadded to the kernel).
    * Every output width is padded to a multiple of 128 with zero columns /
      zero bias lanes; layer m>0's fan-in is padded to the previous layer's
      padded width with zero rows.  Real lanes are bit-identical.
    * `dtype` controls the weight storage/matmul dtype (bf16 halves resident
      VMEM + DMA bytes and uses the bf16-native MXU); biases stay f32 because
      they are added after the f32 accumulate.
    """
    padded = []
    prev_np = None
    for m, (w, b) in enumerate(params):
        k, n = w.shape
        kp = k if m == 0 else prev_np
        n_p = _round_up(n, _LANE)
        wp = jnp.pad(w, ((0, kp - k), (0, n_p - n))).astype(dtype)
        bp = jnp.pad(b, (0, n_p - n)).reshape(1, n_p).astype(jnp.float32)
        padded.append((wp, bp))
        prev_np = n_p
    return tuple(padded)


def _choose_batch_tile(B):
    """Largest VMEM-friendly batch tile, keeping >=2 grid steps for v7x dual-TC
    whenever the batch is large enough to split."""
    if B <= _LANE:
        return _round_up(B, _SUBLANE)
    tb = min(_MAX_BATCH_TILE, _round_up(B, _SUBLANE))
    if B >= 2 * _LANE:
        half = _round_up(pl.cdiv(B, 2), _LANE)
        tb = max(_LANE, min(tb, half))
    return tb


@functools.partial(jax.jit, static_argnames=("out_features",))
def ddmlnet_forward(x, padded_params, *, out_features):
    """DDMLNet.forward: the full Linear+tanh stack in one fused Pallas kernel.

    x:              (B, K0) float32 (unpadded)
    padded_params:  tuple of (Wp, bp) from pad_params()
    out_features:   true (unpadded) width of the final layer
    """
    B, K0 = x.shape
    assert padded_params[0][0].shape[0] == K0, "layer-0 fan-in must match x"
    NLp = padded_params[-1][0].shape[1]

    tb = _choose_batch_tile(B)
    grid = (pl.cdiv(B, tb),)

    # x tile follows the batch grid; K0 equal to the full array dim is legal.
    in_specs = [pl.BlockSpec((tb, K0), lambda i: (i, 0))]
    flat_wb = []
    resident_bytes = 0
    for wp, bp in padded_params:
        kp, n_p = wp.shape
        # Constant index_map => never re-fetched across the batch grid;
        # single-buffer them so they don't cost 2x VMEM.
        in_specs.append(pl.BlockSpec((kp, n_p), lambda i: (0, 0),
                                     pipeline_mode=pl.Buffered(1)))
        in_specs.append(pl.BlockSpec((1, n_p), lambda i: (0, 0),
                                     pipeline_mode=pl.Buffered(1)))
        flat_wb.append(wp)
        flat_wb.append(bp)
        resident_bytes += (wp.size * wp.dtype.itemsize
                           + bp.size * bp.dtype.itemsize)

    # Explicit VMEM budget: resident weights (single-buffered) + double-buffered
    # x/out tiles + the largest live f32 activation, plus compiler headroom.
    max_np = max(wp.shape[1] for wp, _ in padded_params)
    x_tile_b = tb * K0 * 4
    out_tile_b = tb * NLp * 4
    act_b = 2 * tb * max_np * 4
    need = resident_bytes + 2 * x_tile_b + 2 * out_tile_b + act_b
    vmem_limit = int(min(max(need + (8 << 20), 32 << 20), 128 << 20))

    flops = 2 * B * sum(wp.shape[0] * wp.shape[1] for wp, _ in padded_params)
    transcendentals = B * sum(wp.shape[1] for wp, _ in padded_params)
    bytes_accessed = (x.size * x.dtype.itemsize
                      + resident_bytes
                      + B * NLp * 4)

    out = pl.pallas_call(
        _fused_mlp_kernel,
        out_shape=jax.ShapeDtypeStruct((B, NLp), jnp.float32),
        grid=grid,
        in_specs=in_specs,
        # Lane-dense (multiple-of-128) output => unmasked full-width stores.
        out_specs=pl.BlockSpec((tb, NLp), lambda i: (i, 0)),
        compiler_params=pltpu.CompilerParams(
            dimension_semantics=("parallel",),
            vmem_limit_bytes=vmem_limit),
        cost_estimate=pl.CostEstimate(
            flops=flops,
            transcendentals=transcendentals,
            bytes_accessed=bytes_accessed),
    )(x, *flat_wb)

    # Only the lane dim is padded; batch dim is exact (partial edge block is
    # masked on store inside the kernel).
    return out[:, :out_features]


def ddmlnet_forward_ref(x, params):
    """Pure-JAX reference (unpadded) for correctness checking."""
    for w, b in params:
        x = jnp.tanh(x @ w + b[None, :])
    return x


if __name__ == "__main__":
    key = jax.random.PRNGKey(0)

    # Small shapes consistent with the module: layer_shape = [32, 64, 32]
    layer_shape = [32, 64, 32]
    batch = 8

    key, pkey, xkey = jax.random.split(key, 3)
    params = init_ddml_params(layer_shape, pkey)
    x = jax.random.normal(xkey, (batch, layer_shape[0]), dtype=jnp.float32)

    ref = ddmlnet_forward_ref(x, params)

    # f32-weight path: closest to the PyTorch module's numerics.
    pp_f32 = pad_params(params, dtype=jnp.float32)
    out_f32 = jax.block_until_ready(
        ddmlnet_forward(x, pp_f32, out_features=layer_shape[-1]))
    assert out_f32.shape == (batch, layer_shape[-1])
    assert jnp.allclose(out_f32, ref, atol=1e-5, rtol=1e-5), "f32 mismatch"

    # bf16-weight path: MXU-native fast path (f32 accumulate), looser tolerance.
    pp_bf16 = pad_params(params, dtype=jnp.bfloat16)
    out_bf16 = jax.block_until_ready(
        ddmlnet_forward(x, pp_bf16, out_features=layer_shape[-1]))
    assert out_bf16.shape == (batch, layer_shape[-1])
    assert jnp.allclose(out_bf16, ref, atol=2e-2, rtol=2e-2), "bf16 mismatch"

    print("KERNEL_OK")
</pallas_src>

<mosaic_0001>
module attributes {stable_mosaic.version = 11 : i64} {
  func.func @_fused_mlp_kernel(%arg0: i32, %arg1: memref<8x32xf32, #tpu.memory_space<vmem>>, %arg2: memref<32x128xf32, #tpu.memory_space<vmem>>, %arg3: memref<1x128xf32, #tpu.memory_space<vmem>>, %arg4: memref<128x128xf32, #tpu.memory_space<vmem>>, %arg5: memref<1x128xf32, #tpu.memory_space<vmem>>, %arg6: memref<8x128xf32, #tpu.memory_space<vmem>>) attributes {dimension_semantics = [#tpu.dimension_semantics<parallel>], iteration_bounds = array<i64: 1>, scalar_prefetch = 0 : i64, scratch_operands = 0 : i64, tpu.core_type = #tpu.core_type<tc>, window_params = [{transform_indices = @transform_0, window_bounds = array<i64: 8, 32>}, {pipeline_mode = #tpu.pipeline_mode<synchronous>, transform_indices = @transform_1, window_bounds = array<i64: 32, 128>}, {pipeline_mode = #tpu.pipeline_mode<synchronous>, transform_indices = @transform_2, window_bounds = array<i64: 1, 128>}, {pipeline_mode = #tpu.pipeline_mode<synchronous>, transform_indices = @transform_3, window_bounds = array<i64: 128, 128>}, {pipeline_mode = #tpu.pipeline_mode<synchronous>, transform_indices = @transform_4, window_bounds = array<i64: 1, 128>}, {transform_indices = @transform_5, window_bounds = array<i64: 8, 128>}]} {
    %c0 = arith.constant 0 : index
    %c0_0 = arith.constant 0 : index
    %0 = vector.load %arg1[%c0, %c0_0] : memref<8x32xf32, #tpu.memory_space<vmem>>, vector<8x32xf32>
    %c0_1 = arith.constant 0 : index
    %c0_2 = arith.constant 0 : index
    %1 = vector.load %arg2[%c0_1, %c0_2] : memref<32x128xf32, #tpu.memory_space<vmem>>, vector<32x128xf32>
    %c0_3 = arith.constant 0 : index
    %c0_4 = arith.constant 0 : index
    %2 = vector.load %arg3[%c0_3, %c0_4] : memref<1x128xf32, #tpu.memory_space<vmem>>, vector<1x128xf32>
    %cst = arith.constant dense<0.000000e+00> : vector<8x128xf32>
    %3 = tpu.matmul %0, %1, %cst {dimension_numbers = #tpu.dot_dimension_numbers<[1], [0], [0], [1], [0, 0, 1, 1], [], []>} : vector<8x32xf32>, vector<32x128xf32>, vector<8x128xf32> -> vector<8x128xf32>
    %4 = vector.broadcast %2 : vector<1x128xf32> to vector<8x128xf32>
    %5 = arith.addf %3, %4 : vector<8x128xf32>
    %6 = math.tanh %5 : vector<8x128xf32>
    %c0_5 = arith.constant 0 : index
    %c0_6 = arith.constant 0 : index
    %7 = vector.load %arg4[%c0_5, %c0_6] : memref<128x128xf32, #tpu.memory_space<vmem>>, vector<128x128xf32>
    %c0_7 = arith.constant 0 : index
    %c0_8 = arith.constant 0 : index
    %8 = vector.load %arg5[%c0_7, %c0_8] : memref<1x128xf32, #tpu.memory_space<vmem>>, vector<1x128xf32>
    %cst_9 = arith.constant dense<0.000000e+00> : vector<8x128xf32>
    %9 = tpu.matmul %6, %7, %cst_9 {dimension_numbers = #tpu.dot_dimension_numbers<[1], [0], [0], [1], [0, 0, 1, 1], [], []>} : vector<8x128xf32>, vector<128x128xf32>, vector<8x128xf32> -> vector<8x128xf32>
    %10 = vector.broadcast %8 : vector<1x128xf32> to vector<8x128xf32>
    %11 = arith.addf %9, %10 : vector<8x128xf32>
    %12 = math.tanh %11 : vector<8x128xf32>
    %c0_10 = arith.constant 0 : index
    %c0_11 = arith.constant 0 : index
    %13 = vector.load %arg6[%c0_10, %c0_11] : memref<8x128xf32, #tpu.memory_space<vmem>>, vector<8x128xf32>
    tpu.vector_store %arg6[%c0_10, %c0_11], %12 {strides = array<i32>} : memref<8x128xf32, #tpu.memory_space<vmem>>, vector<8x128xf32>,
    return
  }
  func.func @transform_0(%arg0: i32) -> (i32, i32) {
    %c0_i32 = arith.constant 0 : i32
    %c0_i32_0 = arith.constant 0 : i32
    return %arg0, %c0_i32 : i32, i32
  }
  func.func @transform_1(%arg0: i32) -> (i32, i32) {
    %c0_i32 = arith.constant 0 : i32
    %c0_i32_0 = arith.constant 0 : i32
    %c0_i32_1 = arith.constant 0 : i32
    return %c0_i32, %c0_i32_0 : i32, i32
  }
  func.func @transform_2(%arg0: i32) -> (i32, i32) {
    %c0_i32 = arith.constant 0 : i32
    %c0_i32_0 = arith.constant 0 : i32
    %c0_i32_1 = arith.constant 0 : i32
    return %c0_i32, %c0_i32_0 : i32, i32
  }
  func.func @transform_3(%arg0: i32) -> (i32, i32) {
    %c0_i32 = arith.constant 0 : i32
    %c0_i32_0 = arith.constant 0 : i32
    %c0_i32_1 = arith.constant 0 : i32
    return %c0_i32, %c0_i32_0 : i32, i32
  }
  func.func @transform_4(%arg0: i32) -> (i32, i32) {
    %c0_i32 = arith.constant 0 : i32
    %c0_i32_0 = arith.constant 0 : i32
    %c0_i32_1 = arith.constant 0 : i32
    return %c0_i32, %c0_i32_0 : i32, i32
  }
  func.func @transform_5(%arg0: i32) -> (i32, i32) {
    %c0_i32 = arith.constant 0 : i32
    %c0_i32_0 = arith.constant 0 : i32
    return %arg0, %c0_i32 : i32, i32
  }
}

</mosaic_0001>

<llo_original>
// kernel: ddmlnet_forward.1
$region0: #{ddmlnet_forward.1}
  #allocation0 [shape = 'u32[]', space=smem, size = 0x4, offset = 0x4, fixed_abs, tag = 'smem constant byte address 0x4 - core index']
  #allocation1 [shape = 'u32[72,128]{1,0:T(1,128)}', space=vmem, size = 0x9000, scoped, tag = 'internal scratch']
  %s0 = inlined_call_operand.hbm [shape: f32[8,32], index: 0, kind: input, shape index: {}]
  %s1 = inlined_call_operand.hbm [shape: f32[32,128], index: 1, kind: input, shape index: {}]
  %s2 = inlined_call_operand.vmem [shape: f32[1,128], index: 2, kind: input, shape index: {}]
  %s3 = inlined_call_operand.hbm [shape: f32[128,128], index: 3, kind: input, shape index: {}]
  %s4 = inlined_call_operand.vmem [shape: f32[1,128], index: 4, kind: input, shape index: {}]
  %s5 = inlined_call_operand.hbm [shape: f32[8,128], index: 5, kind: output, shape index: {}]
  %s6 = sld [smem:[#allocation0]]
  $region42: #{ddmlnet_forward.1} parent=0
    _
  %s8 = ssub.s32 1, %s6
  %s9 = scalar_select 0, %s8, %s6
  $region1: #{ddmlnet_forward.1} parent=0
    #allocation2 [shape = 'u8[4096]{0}', space=vmem, size = 0x1000, scoped, tag = 'input window, operand 0, single buffered']
    #allocation3 [shape = 's32[1]{0}', space=sflag, size = 0x4, scoped, tag = 'scoped memory for ddmlnet_forward.1']
    #allocation4 [shape = 's32[1]{0}', space=sflag, size = 0x4, scoped, tag = 'scoped memory for ddmlnet_forward.1']
    #allocation5 [shape = 'u8[16384]{0}', space=vmem, size = 0x4000, scoped, tag = 'input window, operand 1, single buffered']
    #allocation6 [shape = 's32[1]{0}', space=sflag, size = 0x4, scoped, tag = 'scoped memory for ddmlnet_forward.1']
    #allocation7 [shape = 'u8[65536]{0}', space=vmem, size = 0x10000, scoped, tag = 'input window, operand 3, single buffered']
    #allocation8 [shape = 'u8[4096]{0}', space=vmem, size = 0x1000, scoped, tag = 'output window, operand 0, single buffered']
    %10 = vsyncpa [#allocation3], 0
    %11 = vsyncpa [#allocation6], 0
    %12 = vsyncpa [#allocation4], 0
    // Predicated region
    $region2: #{ddmlnet_forward.1} parent=1 // pred_check
      _
    $region3: #{ddmlnet_forward.1} parent=1 // pred_check_branch
      %14 = sbr.rel (0) target = $region5
    $region4: #{ddmlnet_forward.1} parent=1 // pred_region
      %16 = vsyncadd [#allocation3], 0
      %s18 = sshll.u32 %s0, 4
      %s19 = int_to_ptr.hbm [resolvable:$true] %s18
      %s20 = sshll.u32 [#allocation2], 4
      %s21 = int_to_ptr.vmem [resolvable:$true] %s20
      %23 = dma.hbm_to_vmem [thread:$0]  %s19, 128, %s21, [#allocation3]
    $region5: #{ddmlnet_forward.1} parent=1 // pred_fallthru
      _
    // Predicated region
    $region6: #{ddmlnet_forward.1} parent=1 // pred_check
      _
    $region7: #{ddmlnet_forward.1} parent=1 // pred_check_branch
      %25 = sbr.rel (0) target = $region9
    $region8: #{ddmlnet_forward.1} parent=1 // pred_region
      %27 = vsyncadd [#allocation6], 0
      %s28 = sshll.u32 %s1, 4
      %s29 = int_to_ptr.hbm [resolvable:$true] %s28
      %s30 = sshll.u32 [#allocation5], 4
      %s31 = int_to_ptr.vmem [resolvable:$true] %s30
      %36 = dma.hbm_to_vmem [thread:$0]  %s29, 512, %s31, [#allocation6], 128, 128, 8
    $region9: #{ddmlnet_forward.1} parent=1 // pred_fallthru
      _
    // Predicated region
    $region10: #{ddmlnet_forward.1} parent=1 // pred_check
      _
    $region11: #{ddmlnet_forward.1} parent=1 // pred_check_branch
      %38 = sbr.rel (0) target = $region13
    $region12: #{ddmlnet_forward.1} parent=1 // pred_region
      _
    $region13: #{ddmlnet_forward.1} parent=1 // pred_fallthru
      _
    // Predicated region
    $region14: #{ddmlnet_forward.1} parent=1 // pred_check
      _
    $region15: #{ddmlnet_forward.1} parent=1 // pred_check_branch
      %40 = sbr.rel (0) target = $region17
    $region16: #{ddmlnet_forward.1} parent=1 // pred_region
      %42 = vsyncadd [#allocation6], 0
      %s43 = sshll.u32 %s3, 4
      %s44 = int_to_ptr.hbm [resolvable:$true] %s43
      %s45 = sshll.u32 [#allocation7], 4
      %s46 = int_to_ptr.vmem [resolvable:$true] %s45
      %51 = dma.hbm_to_vmem [thread:$0]  %s44, 2048, %s46, [#allocation6], 128, 128, 8
    $region17: #{ddmlnet_forward.1} parent=1 // pred_fallthru
      _
    // Predicated region
    $region18: #{ddmlnet_forward.1} parent=1 // pred_check
      _
    $region19: #{ddmlnet_forward.1} parent=1 // pred_check_branch
      %53 = sbr.rel (0) target = $region21
    $region20: #{ddmlnet_forward.1} parent=1 // pred_region
      _
    $region21: #{ddmlnet_forward.1} parent=1 // pred_fallthru
      _
    // Predicated region
    $region22: #{ddmlnet_forward.1} parent=1 // pred_check
      _
    $region23: #{ddmlnet_forward.1} parent=1 // pred_check_branch
      %55 = sbr.rel (0) target = $region25
    $region24: #{ddmlnet_forward.1} parent=1 // pred_region
      %57 = dma.done [#allocation3], 128
    $region25: #{ddmlnet_forward.1} parent=1 // pred_fallthru
      _
    // Predicated region
    $region26: #{ddmlnet_forward.1} parent=1 // pred_check
      _
    $region27: #{ddmlnet_forward.1} parent=1 // pred_check_branch
      %59 = sbr.rel (0) target = $region29
    $region28: #{ddmlnet_forward.1} parent=1 // pred_region
      %61 = dma.done [#allocation6], 512
    $region29: #{ddmlnet_forward.1} parent=1 // pred_fallthru
      _
    // Predicated region
    $region30: #{ddmlnet_forward.1} parent=1 // pred_check
      _
    $region31: #{ddmlnet_forward.1} parent=1 // pred_check_branch
      %63 = sbr.rel (0) target = $region33
    $region32: #{ddmlnet_forward.1} parent=1 // pred_region
      %65 = dma.done [#allocation6], 2048
    $region33: #{ddmlnet_forward.1} parent=1 // pred_fallthru
      _
    %v66 = vld [vmem:[#allocation2] sm:$0xff]
    %v67 = vld [vmem:[#allocation5] sm:$0xff]
    %v68 = vld [vmem:[#allocation5 + $0x8] sm:$0xff]
    %v69 = vld [vmem:[#allocation5 + $0x10] sm:$0xff]
    %v70 = vld [vmem:[#allocation5 + $0x18] sm:$0xff]
    %v71 = vld [vmem:[%s2] sm:$0x1]
    %v73 = vperm.slane %v71, 0
    %vm75 = vcmask 261120
    %v77 = vsel %vm75, %v66, 0
    %79 = vmatpush.msra.mxu0 0.0
    %80 = vmatpush.msra.mxu0 0.0
    %81 = vmatpush.msra.mxu0 0.0
    %82 = vmatpush.msra.mxu0 0.0
    %83 = vmatpush.msra.mxu0 0.0
    %84 = vmatpush.msra.mxu0 0.0
    %85 = vmatpush.msra.mxu0 0.0
    %86 = vmatpush.msra.mxu0 0.0
    %87 = vmatpush.msra.mxu0 0.0
    %88 = vmatpush.msra.mxu0 0.0
    %89 = vmatpush.msra.mxu0 0.0
    %90 = vmatpush.msra.mxu0 0.0
    %91 = vmatpush.msra.mxu0 %v70
    %92 = vmatpush.msra.mxu0 %v69
    %93 = vmatpush.msra.mxu0 %v68
    %94 = vmatpush.msra.mxu0 %v67
    %95 = vmatmul.f32.gmra.mxu0 %v77
    %v96 = vpop.f32.mrf.mxu0
    %v97 = vadd.f32 %v73, %v96
    %98 = vdwg.mxu0
    %v99 = vtanh.pop %v97
    %v100 = vld [vmem:[#allocation7] sm:$0xff]
    %v101 = vld [vmem:[#allocation7 + $0x8] sm:$0xff]
    %v102 = vld [vmem:[#allocation7 + $0x10] sm:$0xff]
    %v103 = vld [vmem:[#allocation7 + $0x18] sm:$0xff]
    %v104 = vld [vmem:[#allocation7 + $0x20] sm:$0xff]
    %v105 = vld [vmem:[#allocation7 + $0x28] sm:$0xff]
    %v106 = vld [vmem:[#allocation7 + $0x30] sm:$0xff]
    %v107 = vld [vmem:[#allocation7 + $0x38] sm:$0xff]
    %v108 = vld [vmem:[#allocation7 + $0x40] sm:$0xff]
    %v109 = vld [vmem:[#allocation7 + $0x48] sm:$0xff]
    %v110 = vld [vmem:[#allocation7 + $0x50] sm:$0xff]
    %v111 = vld [vmem:[#allocation7 + $0x58] sm:$0xff]
    %v112 = vld [vmem:[#allocation7 + $0x60] sm:$0xff]
    %v113 = vld [vmem:[#allocation7 + $0x68] sm:$0xff]
    %v114 = vld [vmem:[#allocation7 + $0x70] sm:$0xff]
    %v115 = vld [vmem:[#allocation7 + $0x78] sm:$0xff]
    %v116 = vld [vmem:[%s4] sm:$0x1]
    %v118 = vperm.slane %v116, 0
    %120 = vmatpush.msra.mxu0 %v115
    %121 = vmatpush.msra.mxu0 %v114
    %122 = vmatpush.msra.mxu0 %v113
    %123 = vmatpush.msra.mxu0 %v112
    %124 = vmatpush.msra.mxu0 %v111
    %125 = vmatpush.msra.mxu0 %v110
    %126 = vmatpush.msra.mxu0 %v109
    %127 = vmatpush.msra.mxu0 %v108
    %128 = vmatpush.msra.mxu0 %v107
    %129 = vmatpush.msra.mxu0 %v106
    %130 = vmatpush.msra.mxu0 %v105
    %131 = vmatpush.msra.mxu0 %v104
    %132 = vmatpush.msra.mxu0 %v103
    %133 = vmatpush.msra.mxu0 %v102
    %134 = vmatpush.msra.mxu0 %v101
    %135 = vmatpush.msra.mxu0 %v100
    %136 = vmatmul.f32.gmra.mxu0 %v99
    %v137 = vpop.f32.mrf.mxu0
    %v138 = vadd.f32 %v118, %v137
    %139 = vdwg.mxu0
    %v140 = vtanh.pop %v138
    %141 = vst [vmem:[#allocation8] sm:$0xff] %v140
    // Predicated region
    $region34: #{ddmlnet_forward.1} parent=1 // pred_check
      _
    $region35: #{ddmlnet_forward.1} parent=1 // pred_check_branch
      %143 = sbr.rel (0) target = $region37
    $region36: #{ddmlnet_forward.1} parent=1 // pred_region
      %145 = vsyncadd [#allocation4], 0
      %s147 = sshll.u32 [#allocation8], 4
      %s148 = int_to_ptr.vmem [resolvable:$true] %s147
      %s149 = sshll.u32 %s5, 4
      %s150 = int_to_ptr.hbm [resolvable:$true] %s149
      %152 = dma.vmem_to_hbm [thread:$0]  %s148, 128, %s150, [#allocation4]
    $region37: #{ddmlnet_forward.1} parent=1 // pred_fallthru
      _
    // Predicated region
    $region38: #{ddmlnet_forward.1} parent=1 // pred_check
      _
    $region39: #{ddmlnet_forward.1} parent=1 // pred_check_branch
      %154 = sbr.rel (0) target = $region41
    $region40: #{ddmlnet_forward.1} parent=1 // pred_region
      %156 = dma.done [#allocation4], 128
    $region41: #{ddmlnet_forward.1} parent=1 // pred_fallthru
      _
    %157 = vsyncpa [#allocation3], 1
    %158 = vsyncpa [#allocation6], 1
    %159 = vsyncpa [#allocation4], 1

</llo_original>
